<compile_context>
chip_gen: v7x
topology: tpu7x:2x2x1
jax: 0.10.0
libtpu: 0.0.40
codegen_flags: <defaults>
</compile_context>

<pallas_src>
import jax
import jax.numpy as jnp
from jax.experimental import pallas as pl
from jax.experimental.pallas import tpu as pltpu


def mlp_kernel(x_ref, w1_ref, b1_ref, w2_ref, b2_ref, w3_ref, b3_ref,
               w4_ref, b4_ref, o_ref):
    # MLP_layer 1: Linear(F -> H1) + ReLU   (dropout = identity at inference)
    h = jnp.dot(x_ref[...], w1_ref[...], preferred_element_type=jnp.float32)
    h = jnp.maximum(h + b1_ref[...], 0.0)

    # MLP_layer 2: Linear(H1 -> H2) + ReLU
    h = jnp.dot(h, w2_ref[...], preferred_element_type=jnp.float32)
    h = jnp.maximum(h + b2_ref[...], 0.0)

    # MLP_layer 3: Linear(H2 -> O) + ReLU
    h = jnp.dot(h, w3_ref[...], preferred_element_type=jnp.float32)
    h = jnp.maximum(h + b3_ref[...], 0.0)

    # Final plain Linear(O -> O)
    o_ref[...] = (jnp.dot(h, w4_ref[...], preferred_element_type=jnp.float32)
                  + b4_ref[...])


def mlp_forward(x, params):
    """x: (B, in_features) float32. params: dict of (fan_in, fan_out) weights
    and (1, fan_out) biases. Single pallas_call, everything resident in VMEM."""
    B = x.shape[0]
    O = params["w4"].shape[1]
    operands = (x,
                params["w1"], params["b1"],
                params["w2"], params["b2"],
                params["w3"], params["b3"],
                params["w4"], params["b4"])
    vmem_spec = lambda: pl.BlockSpec(memory_space=pltpu.MemorySpace.VMEM)
    return pl.pallas_call(
        mlp_kernel,
        out_shape=jax.ShapeDtypeStruct((B, O), jnp.float32),
        in_specs=[vmem_spec() for _ in operands],
        out_specs=vmem_spec(),
    )(*operands)


def make_params(key, in_features, hidden_sizes, out_features):
    """Deterministic synthetic parameters for the 4-layer MLP."""
    h1, h2 = hidden_sizes
    ks = jax.random.split(key, 8)
    scale = 0.05
    return {
        # MLP_layer(F, H1)
        "w1": scale * jax.random.normal(ks[0], (in_features, h1), jnp.float32),
        "b1": scale * jax.random.normal(ks[1], (1, h1), jnp.float32),
        # MLP_layer(H1, H2)
        "w2": scale * jax.random.normal(ks[2], (h1, h2), jnp.float32),
        "b2": scale * jax.random.normal(ks[3], (1, h2), jnp.float32),
        # MLP_layer(H2, O)
        "w3": scale * jax.random.normal(ks[4], (h2, out_features), jnp.float32),
        "b3": scale * jax.random.normal(ks[5], (1, out_features), jnp.float32),
        # final Linear(O, O)
        "w4": scale * jax.random.normal(ks[6], (out_features, out_features), jnp.float32),
        "b4": scale * jax.random.normal(ks[7], (1, out_features), jnp.float32),
    }


def reference_forward(x, params):
    """Pure-JAX reference matching the PyTorch MLP forward (eval mode)."""
    h = jnp.maximum(x @ params["w1"] + params["b1"], 0.0)
    h = jnp.maximum(h @ params["w2"] + params["b2"], 0.0)
    h = jnp.maximum(h @ params["w3"] + params["b3"], 0.0)
    return h @ params["w4"] + params["b4"]


if __name__ == "__main__":
    B, F = 8, 32
    hidden_sizes = [64, 32]
    O = 8

    key = jax.random.PRNGKey(0)
    kx, kp = jax.random.split(key)
    x = jax.random.normal(kx, (B, F), jnp.float32)
    params = make_params(kp, F, hidden_sizes, O)

    out = mlp_forward(x, params)
    out = jax.block_until_ready(out)

    ref = reference_forward(x, params)
    assert out.shape == (B, O)
    assert jnp.allclose(out, ref, atol=1e-4, rtol=1e-4), "mismatch vs reference"

    print("KERNEL_OK")
</pallas_src>

<mosaic_0001>
module attributes {stable_mosaic.version = 11 : i64} {
  func.func @mlp_kernel(%arg0: memref<8x32xf32, #tpu.memory_space<vmem>>, %arg1: memref<32x64xf32, #tpu.memory_space<vmem>>, %arg2: memref<1x64xf32, #tpu.memory_space<vmem>>, %arg3: memref<64x32xf32, #tpu.memory_space<vmem>>, %arg4: memref<1x32xf32, #tpu.memory_space<vmem>>, %arg5: memref<32x8xf32, #tpu.memory_space<vmem>>, %arg6: memref<1x8xf32, #tpu.memory_space<vmem>>, %arg7: memref<8x8xf32, #tpu.memory_space<vmem>>, %arg8: memref<1x8xf32, #tpu.memory_space<vmem>>, %arg9: memref<8x8xf32, #tpu.memory_space<vmem>>) attributes {dimension_semantics = [], scalar_prefetch = 0 : i64, scratch_operands = 0 : i64, tpu.core_type = #tpu.core_type<tc>} {
    %c0 = arith.constant 0 : index
    %c0_0 = arith.constant 0 : index
    %0 = vector.load %arg0[%c0, %c0_0] : memref<8x32xf32, #tpu.memory_space<vmem>>, vector<8x32xf32>
    %c0_1 = arith.constant 0 : index
    %c0_2 = arith.constant 0 : index
    %1 = vector.load %arg1[%c0_1, %c0_2] : memref<32x64xf32, #tpu.memory_space<vmem>>, vector<32x64xf32>
    %cst = arith.constant dense<0.000000e+00> : vector<8x64xf32>
    %2 = tpu.matmul %0, %1, %cst {dimension_numbers = #tpu.dot_dimension_numbers<[1], [0], [0], [1], [0, 0, 1, 1], [], []>} : vector<8x32xf32>, vector<32x64xf32>, vector<8x64xf32> -> vector<8x64xf32>
    %c0_3 = arith.constant 0 : index
    %c0_4 = arith.constant 0 : index
    %3 = vector.load %arg2[%c0_3, %c0_4] : memref<1x64xf32, #tpu.memory_space<vmem>>, vector<1x64xf32>
    %4 = vector.broadcast %3 : vector<1x64xf32> to vector<8x64xf32>
    %5 = arith.addf %2, %4 : vector<8x64xf32>
    %cst_5 = arith.constant 0.000000e+00 : f32
    %6 = vector.broadcast %cst_5 : f32 to vector<8x64xf32>
    %7 = arith.maximumf %5, %6 : vector<8x64xf32>
    %c0_6 = arith.constant 0 : index
    %c0_7 = arith.constant 0 : index
    %8 = vector.load %arg3[%c0_6, %c0_7] : memref<64x32xf32, #tpu.memory_space<vmem>>, vector<64x32xf32>
    %cst_8 = arith.constant dense<0.000000e+00> : vector<8x32xf32>
    %9 = tpu.matmul %7, %8, %cst_8 {dimension_numbers = #tpu.dot_dimension_numbers<[1], [0], [0], [1], [0, 0, 1, 1], [], []>} : vector<8x64xf32>, vector<64x32xf32>, vector<8x32xf32> -> vector<8x32xf32>
    %c0_9 = arith.constant 0 : index
    %c0_10 = arith.constant 0 : index
    %10 = vector.load %arg4[%c0_9, %c0_10] : memref<1x32xf32, #tpu.memory_space<vmem>>, vector<1x32xf32>
    %11 = vector.broadcast %10 : vector<1x32xf32> to vector<8x32xf32>
    %12 = arith.addf %9, %11 : vector<8x32xf32>
    %cst_11 = arith.constant 0.000000e+00 : f32
    %13 = vector.broadcast %cst_11 : f32 to vector<8x32xf32>
    %14 = arith.maximumf %12, %13 : vector<8x32xf32>
    %c0_12 = arith.constant 0 : index
    %c0_13 = arith.constant 0 : index
    %15 = vector.load %arg5[%c0_12, %c0_13] : memref<32x8xf32, #tpu.memory_space<vmem>>, vector<32x8xf32>
    %cst_14 = arith.constant dense<0.000000e+00> : vector<8x8xf32>
    %16 = tpu.matmul %14, %15, %cst_14 {dimension_numbers = #tpu.dot_dimension_numbers<[1], [0], [0], [1], [0, 0, 1, 1], [], []>} : vector<8x32xf32>, vector<32x8xf32>, vector<8x8xf32> -> vector<8x8xf32>
    %c0_15 = arith.constant 0 : index
    %c0_16 = arith.constant 0 : index
    %17 = vector.load %arg6[%c0_15, %c0_16] : memref<1x8xf32, #tpu.memory_space<vmem>>, vector<1x8xf32>
    %18 = vector.broadcast %17 : vector<1x8xf32> to vector<8x8xf32>
    %19 = arith.addf %16, %18 : vector<8x8xf32>
    %cst_17 = arith.constant 0.000000e+00 : f32
    %20 = vector.broadcast %cst_17 : f32 to vector<8x8xf32>
    %21 = arith.maximumf %19, %20 : vector<8x8xf32>
    %c0_18 = arith.constant 0 : index
    %c0_19 = arith.constant 0 : index
    %22 = vector.load %arg7[%c0_18, %c0_19] : memref<8x8xf32, #tpu.memory_space<vmem>>, vector<8x8xf32>
    %cst_20 = arith.constant dense<0.000000e+00> : vector<8x8xf32>
    %23 = tpu.matmul %21, %22, %cst_20 {dimension_numbers = #tpu.dot_dimension_numbers<[1], [0], [0], [1], [0, 0, 1, 1], [], []>} : vector<8x8xf32>, vector<8x8xf32>, vector<8x8xf32> -> vector<8x8xf32>
    %c0_21 = arith.constant 0 : index
    %c0_22 = arith.constant 0 : index
    %24 = vector.load %arg8[%c0_21, %c0_22] : memref<1x8xf32, #tpu.memory_space<vmem>>, vector<1x8xf32>
    %25 = vector.broadcast %24 : vector<1x8xf32> to vector<8x8xf32>
    %26 = arith.addf %23, %25 : vector<8x8xf32>
    %c0_23 = arith.constant 0 : index
    %c0_24 = arith.constant 0 : index
    %27 = vector.load %arg9[%c0_23, %c0_24] : memref<8x8xf32, #tpu.memory_space<vmem>>, vector<8x8xf32>
    tpu.vector_store %arg9[%c0_23, %c0_24], %26 {strides = array<i32>} : memref<8x8xf32, #tpu.memory_space<vmem>>, vector<8x8xf32>,
    return
  }
}

</mosaic_0001>

<llo_original>
// kernel: tpu_custom_call.1
$region0: #{tpu_custom_call.1}
  #allocation0 [shape = 'u32[]', space=smem, size = 0x4, offset = 0x4, fixed_abs, tag = 'smem constant byte address 0x4 - core index']
  #allocation1 [shape = 'u32[144,128]{1,0:T(1,128)}', space=vmem, size = 0x12000, scoped, tag = 'internal scratch']
  %s0 = inlined_call_operand.vmem [shape: f32[8,32], index: 0, kind: input, shape index: {}]
  %s1 = inlined_call_operand.vmem [shape: f32[32,64], index: 1, kind: input, shape index: {}]
  %s2 = inlined_call_operand.vmem [shape: f32[1,64], index: 2, kind: input, shape index: {}]
  %s3 = inlined_call_operand.vmem [shape: f32[64,32], index: 3, kind: input, shape index: {}]
  %s4 = inlined_call_operand.vmem [shape: f32[1,32], index: 4, kind: input, shape index: {}]
  %s5 = inlined_call_operand.vmem [shape: f32[32,8], index: 5, kind: input, shape index: {}]
  %s6 = inlined_call_operand.vmem [shape: f32[1,8], index: 6, kind: input, shape index: {}]
  %s7 = inlined_call_operand.vmem [shape: f32[8,8], index: 7, kind: input, shape index: {}]
  %s8 = inlined_call_operand.vmem [shape: f32[1,8], index: 8, kind: input, shape index: {}]
  %s9 = inlined_call_operand.hbm [shape: f32[8,8], index: 9, kind: output, shape index: {}]
  %s10 = sld [smem:[#allocation0]]
  $region46: #{tpu_custom_call.1} parent=0
    _
  %s12 = ssub.s32 1, %s10
  %s13 = scalar_select 0, %s12, %s10
  $region1: #{tpu_custom_call.1} parent=0
    #allocation2 [shape = 'u8[4096]{0}', space=vmem, size = 0x1000, scoped, tag = 'output window, operand 0, single buffered']
    #allocation3 [shape = 's32[1]{0}', space=sflag, size = 0x4, scoped, tag = 'scoped memory for tpu_custom_call.1']
    %14 = vsyncpa [#allocation3], 0
    // Predicated region
    $region2: #{tpu_custom_call.1} parent=1 // pred_check
      _
    $region3: #{tpu_custom_call.1} parent=1 // pred_check_branch
      %16 = sbr.rel (0) target = $region5
    $region4: #{tpu_custom_call.1} parent=1 // pred_region
      _
    $region5: #{tpu_custom_call.1} parent=1 // pred_fallthru
      _
    // Predicated region
    $region6: #{tpu_custom_call.1} parent=1 // pred_check
      _
    $region7: #{tpu_custom_call.1} parent=1 // pred_check_branch
      %18 = sbr.rel (0) target = $region9
    $region8: #{tpu_custom_call.1} parent=1 // pred_region
      _
    $region9: #{tpu_custom_call.1} parent=1 // pred_fallthru
      _
    // Predicated region
    $region10: #{tpu_custom_call.1} parent=1 // pred_check
      _
    $region11: #{tpu_custom_call.1} parent=1 // pred_check_branch
      %20 = sbr.rel (0) target = $region13
    $region12: #{tpu_custom_call.1} parent=1 // pred_region
      _
    $region13: #{tpu_custom_call.1} parent=1 // pred_fallthru
      _
    // Predicated region
    $region14: #{tpu_custom_call.1} parent=1 // pred_check
      _
    $region15: #{tpu_custom_call.1} parent=1 // pred_check_branch
      %22 = sbr.rel (0) target = $region17
    $region16: #{tpu_custom_call.1} parent=1 // pred_region
      _
    $region17: #{tpu_custom_call.1} parent=1 // pred_fallthru
      _
    // Predicated region
    $region18: #{tpu_custom_call.1} parent=1 // pred_check
      _
    $region19: #{tpu_custom_call.1} parent=1 // pred_check_branch
      %24 = sbr.rel (0) target = $region21
    $region20: #{tpu_custom_call.1} parent=1 // pred_region
      _
    $region21: #{tpu_custom_call.1} parent=1 // pred_fallthru
      _
    // Predicated region
    $region22: #{tpu_custom_call.1} parent=1 // pred_check
      _
    $region23: #{tpu_custom_call.1} parent=1 // pred_check_branch
      %26 = sbr.rel (0) target = $region25
    $region24: #{tpu_custom_call.1} parent=1 // pred_region
      _
    $region25: #{tpu_custom_call.1} parent=1 // pred_fallthru
      _
    // Predicated region
    $region26: #{tpu_custom_call.1} parent=1 // pred_check
      _
    $region27: #{tpu_custom_call.1} parent=1 // pred_check_branch
      %28 = sbr.rel (0) target = $region29
    $region28: #{tpu_custom_call.1} parent=1 // pred_region
      _
    $region29: #{tpu_custom_call.1} parent=1 // pred_fallthru
      _
    // Predicated region
    $region30: #{tpu_custom_call.1} parent=1 // pred_check
      _
    $region31: #{tpu_custom_call.1} parent=1 // pred_check_branch
      %30 = sbr.rel (0) target = $region33
    $region32: #{tpu_custom_call.1} parent=1 // pred_region
      _
    $region33: #{tpu_custom_call.1} parent=1 // pred_fallthru
      _
    // Predicated region
    $region34: #{tpu_custom_call.1} parent=1 // pred_check
      _
    $region35: #{tpu_custom_call.1} parent=1 // pred_check_branch
      %32 = sbr.rel (0) target = $region37
    $region36: #{tpu_custom_call.1} parent=1 // pred_region
      _
    $region37: #{tpu_custom_call.1} parent=1 // pred_fallthru
      _
    %v33 = vld [vmem:[%s0] sm:$0xff]
    %v34 = vld [vmem:[%s1] sm:$0xff]
    %v35 = vld [vmem:[%s1 + $0x8] sm:$0xff]
    %v36 = vld [vmem:[%s1 + $0x10] sm:$0xff]
    %v37 = vld [vmem:[%s1 + $0x18] sm:$0xff]
    %v38 = vld [vmem:[%s2] sm:$0x1]
    %v40 = vlaneseq
    %v41 = vshrl.u32 %v40, 7
    %v42 = vsub.s32 0, %v41
    %v43 = vrot.slane %v38, %v42
    %vm45 = vcmask 261120
    %v47 = vsel %vm45, %v33, 0
    %49 = vmatprep.subr.mxu0 0.0
    %50 = vmatpush1.msra.mxu0 %v34
    %51 = vmatprep.subr.mxu0 0.0
    %52 = vmatpush1.msra.mxu0 %v35
    %53 = vmatprep.subr.mxu0 0.0
    %54 = vmatpush1.msra.mxu0 %v36
    %55 = vmatprep.subr.mxu0 0.0
    %56 = vmatpush1.msra.mxu0 %v37
    %57 = vmatprep.subr.mxu0 0.0
    %58 = vmatpush1.msra.mxu0 0.0
    %59 = vmatprep.subr.mxu0 0.0
    %60 = vmatpush1.msra.mxu0 0.0
    %61 = vmatprep.subr.mxu0 0.0
    %62 = vmatpush1.msra.mxu0 0.0
    %63 = vmatprep.subr.mxu0 0.0
    %64 = vmatpush1.msra.mxu0 0.0
    %65 = vmatprep.subr.mxu0 0.0
    %66 = vmatpush1.msra.mxu0 0.0
    %67 = vmatprep.subr.mxu0 0.0
    %68 = vmatpush1.msra.mxu0 0.0
    %69 = vmatprep.subr.mxu0 0.0
    %70 = vmatpush1.msra.mxu0 0.0
    %71 = vmatprep.subr.mxu0 0.0
    %72 = vmatpush1.msra.mxu0 0.0
    %73 = vmatprep.subr.mxu0 0.0
    %74 = vmatpush1.msra.mxu0 0.0
    %75 = vmatprep.subr.mxu0 0.0
    %76 = vmatpush1.msra.mxu0 0.0
    %77 = vmatprep.subr.mxu0 0.0
    %78 = vmatpush1.msra.mxu0 0.0
    %79 = vmatprep.subr.mxu0 0.0
    %80 = vmatpush1.msra.mxu0 0.0
    %81 = vmatprep.subr.mxu0 0.0
    %82 = vmatpush1.msra.mxu0 0.0
    %83 = vmatprep.subr.mxu0 0.0
    %84 = vmatpush1.msra.mxu0 0.0
    %85 = vmatprep.subr.mxu0 0.0
    %86 = vmatpush1.msra.mxu0 0.0
    %87 = vmatprep.subr.mxu0 0.0
    %88 = vmatpush1.msra.mxu0 0.0
    %89 = vmatprep.subr.mxu0 0.0
    %90 = vmatpush1.msra.mxu0 0.0
    %91 = vmatprep.subr.mxu0 0.0
    %92 = vmatpush1.msra.mxu0 0.0
    %93 = vmatprep.subr.mxu0 0.0
    %94 = vmatpush1.msra.mxu0 0.0
    %95 = vmatprep.subr.mxu0 0.0
    %96 = vmatpush1.msra.mxu0 0.0
    %97 = vmatprep.subr.mxu0 0.0
    %98 = vmatpush1.msra.mxu0 0.0
    %99 = vmatprep.subr.mxu0 0.0
    %100 = vmatpush1.msra.mxu0 0.0
    %101 = vmatprep.subr.mxu0 0.0
    %102 = vmatpush1.msra.mxu0 0.0
    %103 = vmatprep.subr.mxu0 0.0
    %104 = vmatpush1.msra.mxu0 0.0
    %105 = vmatprep.subr.mxu0 0.0
    %106 = vmatpush1.msra.mxu0 0.0
    %107 = vmatprep.subr.mxu0 0.0
    %108 = vmatpush1.msra.mxu0 0.0
    %109 = vmatprep.subr.mxu0 0.0
    %110 = vmatpush1.msra.mxu0 0.0
    %111 = vmatprep.subr.mxu0 0.0
    %112 = vmatpush1.msra.mxu0 0.0
    %113 = vmatprep.mubr.f32.mxu0 0.0
    %114 = vmatmul.mubr.f32.gmra.mrb[0].mxu0 %v47
    %v115 = vpop.f32.mrb[0].mxu0
    %v116 = vadd.f32 %v43, %v115
    %v117 = vpop.f32.mrb[0].mxu0
    %118 = vdwg.mxu0
    %v119 = vmax.f32 %v116, 0.0
    %v120 = vld [vmem:[%s3] sm:$0xff]
    %v121 = vld [vmem:[%s3 + $0x8] sm:$0xff]
    %v122 = vld [vmem:[%s3 + $0x10] sm:$0xff]
    %v123 = vld [vmem:[%s3 + $0x18] sm:$0xff]
    %v124 = vld [vmem:[%s3 + $0x20] sm:$0xff]
    %v125 = vld [vmem:[%s3 + $0x28] sm:$0xff]
    %v126 = vld [vmem:[%s3 + $0x30] sm:$0xff]
    %v127 = vld [vmem:[%s3 + $0x38] sm:$0xff]
    %v128 = vld [vmem:[%s4] sm:$0x1]
    %v130 = vlaneseq
    %v131 = vshrl.u32 %v130, 7
    %v132 = vsub.s32 0, %v131
    %v133 = vrot.slane %v128, %v132
    %vm135 = vcmask 523264
    %v137 = vsel %vm135, %v119, 0
    %139 = vmatprep.subr.mxu0 0.0
    %140 = vmatpush1.msra.mxu0 %v120
    %141 = vmatprep.subr.mxu0 0.0
    %142 = vmatpush1.msra.mxu0 %v121
    %143 = vmatprep.subr.mxu0 0.0
    %144 = vmatpush1.msra.mxu0 %v122
    %145 = vmatprep.subr.mxu0 0.0
    %146 = vmatpush1.msra.mxu0 %v123
    %147 = vmatprep.subr.mxu0 0.0
    %148 = vmatpush1.msra.mxu0 %v124
    %149 = vmatprep.subr.mxu0 0.0
    %150 = vmatpush1.msra.mxu0 %v125
    %151 = vmatprep.subr.mxu0 0.0
    %152 = vmatpush1.msra.mxu0 %v126
    %153 = vmatprep.subr.mxu0 0.0
    %154 = vmatpush1.msra.mxu0 %v127
    %155 = vmatprep.subr.mxu0 0.0
    %156 = vmatpush1.msra.mxu0 0.0
    %157 = vmatprep.subr.mxu0 0.0
    %158 = vmatpush1.msra.mxu0 0.0
    %159 = vmatprep.subr.mxu0 0.0
    %160 = vmatpush1.msra.mxu0 0.0
    %161 = vmatprep.subr.mxu0 0.0
    %162 = vmatpush1.msra.mxu0 0.0
    %163 = vmatprep.subr.mxu0 0.0
    %164 = vmatpush1.msra.mxu0 0.0
    %165 = vmatprep.subr.mxu0 0.0
    %166 = vmatpush1.msra.mxu0 0.0
    %167 = vmatprep.subr.mxu0 0.0
    %168 = vmatpush1.msra.mxu0 0.0
    %169 = vmatprep.subr.mxu0 0.0
    %170 = vmatpush1.msra.mxu0 0.0
    %171 = vmatprep.subr.mxu0 0.0
    %172 = vmatpush1.msra.mxu0 0.0
    %173 = vmatprep.subr.mxu0 0.0
    %174 = vmatpush1.msra.mxu0 0.0
    %175 = vmatprep.subr.mxu0 0.0
    %176 = vmatpush1.msra.mxu0 0.0
    %177 = vmatprep.subr.mxu0 0.0
    %178 = vmatpush1.msra.mxu0 0.0
    %179 = vmatprep.subr.mxu0 0.0
    %180 = vmatpush1.msra.mxu0 0.0
    %181 = vmatprep.subr.mxu0 0.0
    %182 = vmatpush1.msra.mxu0 0.0
    %183 = vmatprep.subr.mxu0 0.0
    %184 = vmatpush1.msra.mxu0 0.0
    %185 = vmatprep.subr.mxu0 0.0
    %186 = vmatpush1.msra.mxu0 0.0
    %187 = vmatprep.subr.mxu0 0.0
    %188 = vmatpush1.msra.mxu0 0.0
    %189 = vmatprep.subr.mxu0 0.0
    %190 = vmatpush1.msra.mxu0 0.0
    %191 = vmatprep.subr.mxu0 0.0
    %192 = vmatpush1.msra.mxu0 0.0
    %193 = vmatprep.subr.mxu0 0.0
    %194 = vmatpush1.msra.mxu0 0.0
    %195 = vmatprep.subr.mxu0 0.0
    %196 = vmatpush1.msra.mxu0 0.0
    %197 = vmatprep.subr.mxu0 0.0
    %198 = vmatpush1.msra.mxu0 0.0
    %199 = vmatprep.subr.mxu0 0.0
    %200 = vmatpush1.msra.mxu0 0.0
    %201 = vmatprep.subr.mxu0 0.0
    %202 = vmatpush1.msra.mxu0 0.0
    %203 = vmatprep.mubr.f32.mxu0 0.0
    %204 = vmatmul.mubr.f32.gmra.mrb[0].mxu0 %v137
    %v205 = vpop.f32.mrb[0].mxu0
    %v206 = vadd.f32 %v133, %v205
    %v207 = vpop.f32.mrb[0].mxu0
    %208 = vdwg.mxu0
    %v209 = vmax.f32 %v206, 0.0
    %v210 = vld [vmem:[%s5] sm:$0xff]
    %v211 = vld [vmem:[%s5 + $0x8] sm:$0xff]
    %v212 = vld [vmem:[%s5 + $0x10] sm:$0xff]
    %v213 = vld [vmem:[%s5 + $0x18] sm:$0xff]
    %v214 = vld [vmem:[%s6] sm:$0x1]
    %v216 = vlaneseq
    %v217 = vshrl.u32 %v216, 7
    %v218 = vsub.s32 0, %v217
    %v219 = vrot.slane %v214, %v218
    %v222 = vsel %vm45, %v209, 0
    %224 = vmatprep.subr.mxu0 0.0
    %225 = vmatpush1.msra.mxu0 %v210
    %226 = vmatprep.subr.mxu0 0.0
    %227 = vmatpush1.msra.mxu0 %v211
    %228 = vmatprep.subr.mxu0 0.0
    %229 = vmatpush1.msra.mxu0 %v212
    %230 = vmatprep.subr.mxu0 0.0
    %231 = vmatpush1.msra.mxu0 %v213
    %232 = vmatprep.subr.mxu0 0.0
    %233 = vmatpush1.msra.mxu0 0.0
    %234 = vmatprep.subr.mxu0 0.0
    %235 = vmatpush1.msra.mxu0 0.0
    %236 = vmatprep.subr.mxu0 0.0
    %237 = vmatpush1.msra.mxu0 0.0
    %238 = vmatprep.subr.mxu0 0.0
    %239 = vmatpush1.msra.mxu0 0.0
    %240 = vmatprep.subr.mxu0 0.0
    %241 = vmatpush1.msra.mxu0 0.0
    %242 = vmatprep.subr.mxu0 0.0
    %243 = vmatpush1.msra.mxu0 0.0
    %244 = vmatprep.subr.mxu0 0.0
    %245 = vmatpush1.msra.mxu0 0.0
    %246 = vmatprep.subr.mxu0 0.0
    %247 = vmatpush1.msra.mxu0 0.0
    %248 = vmatprep.subr.mxu0 0.0
    %249 = vmatpush1.msra.mxu0 0.0
    %250 = vmatprep.subr.mxu0 0.0
    %251 = vmatpush1.msra.mxu0 0.0
    %252 = vmatprep.subr.mxu0 0.0
    %253 = vmatpush1.msra.mxu0 0.0
    %254 = vmatprep.subr.mxu0 0.0
    %255 = vmatpush1.msra.mxu0 0.0
    %256 = vmatprep.subr.mxu0 0.0
    %257 = vmatpush1.msra.mxu0 0.0
    %258 = vmatprep.subr.mxu0 0.0
    %259 = vmatpush1.msra.mxu0 0.0
    %260 = vmatprep.subr.mxu0 0.0
    %261 = vmatpush1.msra.mxu0 0.0
    %262 = vmatprep.subr.mxu0 0.0
    %263 = vmatpush1.msra.mxu0 0.0
    %264 = vmatprep.subr.mxu0 0.0
    %265 = vmatpush1.msra.mxu0 0.0
    %266 = vmatprep.subr.mxu0 0.0
    %267 = vmatpush1.msra.mxu0 0.0
    %268 = vmatprep.subr.mxu0 0.0
    %269 = vmatpush1.msra.mxu0 0.0
    %270 = vmatprep.subr.mxu0 0.0
    %271 = vmatpush1.msra.mxu0 0.0
    %272 = vmatprep.subr.mxu0 0.0
    %273 = vmatpush1.msra.mxu0 0.0
    %274 = vmatprep.subr.mxu0 0.0
    %275 = vmatpush1.msra.mxu0 0.0
    %276 = vmatprep.subr.mxu0 0.0
    %277 = vmatpush1.msra.mxu0 0.0
    %278 = vmatprep.subr.mxu0 0.0
    %279 = vmatpush1.msra.mxu0 0.0
    %280 = vmatprep.subr.mxu0 0.0
    %281 = vmatpush1.msra.mxu0 0.0
    %282 = vmatprep.subr.mxu0 0.0
    %283 = vmatpush1.msra.mxu0 0.0
    %284 = vmatprep.subr.mxu0 0.0
    %285 = vmatpush1.msra.mxu0 0.0
    %286 = vmatprep.subr.mxu0 0.0
    %287 = vmatpush1.msra.mxu0 0.0
    %288 = vmatprep.mubr.f32.mxu0 0.0
    %289 = vmatmul.mubr.f32.gmra.mrb[0].mxu0 %v222
    %v290 = vpop.f32.mrb[0].mxu0
    %v291 = vadd.f32 %v219, %v290
    %v292 = vpop.f32.mrb[0].mxu0
    %293 = vdwg.mxu0
    %v294 = vmax.f32 %v291, 0.0
    %v295 = vld [vmem:[%s7] sm:$0xff]
    %v296 = vld [vmem:[%s8] sm:$0x1]
    %v298 = vlaneseq
    %v299 = vshrl.u32 %v298, 7
    %v300 = vsub.s32 0, %v299
    %v301 = vrot.slane %v296, %v300
    %vm303 = vcmask 64512
    %v305 = vsel %vm303, %v294, 0
    %307 = vmatprep.subr.mxu0 0.0
    %308 = vmatpush1.msra.mxu0 %v295
    %309 = vmatprep.subr.mxu0 0.0
    %310 = vmatpush1.msra.mxu0 0.0
    %311 = vmatprep.subr.mxu0 0.0
    %312 = vmatpush1.msra.mxu0 0.0
    %313 = vmatprep.subr.mxu0 0.0
    %314 = vmatpush1.msra.mxu0 0.0
    %315 = vmatprep.subr.mxu0 0.0
    %316 = vmatpush1.msra.mxu0 0.0
    %317 = vmatprep.subr.mxu0 0.0
    %318 = vmatpush1.msra.mxu0 0.0
    %319 = vmatprep.subr.mxu0 0.0
    %320 = vmatpush1.msra.mxu0 0.0
    %321 = vmatprep.subr.mxu0 0.0
    %322 = vmatpush1.msra.mxu0 0.0
    %323 = vmatprep.subr.mxu0 0.0
    %324 = vmatpush1.msra.mxu0 0.0
    %325 = vmatprep.subr.mxu0 0.0
    %326 = vmatpush1.msra.mxu0 0.0
    %327 = vmatprep.subr.mxu0 0.0
    %328 = vmatpush1.msra.mxu0 0.0
    %329 = vmatprep.subr.mxu0 0.0
    %330 = vmatpush1.msra.mxu0 0.0
    %331 = vmatprep.subr.mxu0 0.0
    %332 = vmatpush1.msra.mxu0 0.0
    %333 = vmatprep.subr.mxu0 0.0
    %334 = vmatpush1.msra.mxu0 0.0
    %335 = vmatprep.subr.mxu0 0.0
    %336 = vmatpush1.msra.mxu0 0.0
    %337 = vmatprep.subr.mxu0 0.0
    %338 = vmatpush1.msra.mxu0 0.0
    %339 = vmatprep.subr.mxu0 0.0
    %340 = vmatpush1.msra.mxu0 0.0
    %341 = vmatprep.subr.mxu0 0.0
    %342 = vmatpush1.msra.mxu0 0.0
    %343 = vmatprep.subr.mxu0 0.0
    %344 = vmatpush1.msra.mxu0 0.0
    %345 = vmatprep.subr.mxu0 0.0
    %346 = vmatpush1.msra.mxu0 0.0
    %347 = vmatprep.subr.mxu0 0.0
    %348 = vmatpush1.msra.mxu0 0.0
    %349 = vmatprep.subr.mxu0 0.0
    %350 = vmatpush1.msra.mxu0 0.0
    %351 = vmatprep.subr.mxu0 0.0
    %352 = vmatpush1.msra.mxu0 0.0
    %353 = vmatprep.subr.mxu0 0.0
    %354 = vmatpush1.msra.mxu0 0.0
    %355 = vmatprep.subr.mxu0 0.0
    %356 = vmatpush1.msra.mxu0 0.0
    %357 = vmatprep.subr.mxu0 0.0
    %358 = vmatpush1.msra.mxu0 0.0
    %359 = vmatprep.subr.mxu0 0.0
    %360 = vmatpush1.msra.mxu0 0.0
    %361 = vmatprep.subr.mxu0 0.0
    %362 = vmatpush1.msra.mxu0 0.0
    %363 = vmatprep.subr.mxu0 0.0
    %364 = vmatpush1.msra.mxu0 0.0
    %365 = vmatprep.subr.mxu0 0.0
    %366 = vmatpush1.msra.mxu0 0.0
    %367 = vmatprep.subr.mxu0 0.0
    %368 = vmatpush1.msra.mxu0 0.0
    %369 = vmatprep.subr.mxu0 0.0
    %370 = vmatpush1.msra.mxu0 0.0
    %371 = vmatprep.mubr.f32.mxu0 0.0
    %372 = vmatmul.mubr.f32.gmra.mrb[0].mxu0 %v305
    %v373 = vpop.f32.mrb[0].mxu0
    %v374 = vadd.f32 %v301, %v373
    %v375 = vpop.f32.mrb[0].mxu0
    %376 = vdwg.mxu0
    %377 = vst.msk [vmem:[#allocation2] sm:$0xff] %vm303, %v374
    // Predicated region
    $region38: #{tpu_custom_call.1} parent=1 // pred_check
      _
    $region39: #{tpu_custom_call.1} parent=1 // pred_check_branch
      %379 = sbr.rel (0) target = $region41
    $region40: #{tpu_custom_call.1} parent=1 // pred_region
      %s381 = ssub.s32 128, 128
      %382 = vsyncadd [#allocation3], %s381
      %s384 = sshll.u32 [#allocation2], 4
      %s385 = int_to_ptr.vmem [resolvable:$true] %s384
      %387 = dma.vmem_to_hbm [thread:$0]  %s385, 128, %s9, [#allocation3]
    $region41: #{tpu_custom_call.1} parent=1 // pred_fallthru
      _
    // Predicated region
    $region42: #{tpu_custom_call.1} parent=1 // pred_check
      _
    $region43: #{tpu_custom_call.1} parent=1 // pred_check_branch
      %389 = sbr.rel (0) target = $region45
    $region44: #{tpu_custom_call.1} parent=1 // pred_region
      %390 = dma.done [#allocation3], 128
    $region45: #{tpu_custom_call.1} parent=1 // pred_fallthru
      _
    %391 = vsyncpa [#allocation3], 1

</llo_original>
